<compile_context>
chip_gen: v7x
topology: tpu7x:2x2x1
jax: 0.10.0
libtpu: 0.0.40
codegen_flags: <defaults>
</compile_context>

<pallas_src>
import jax
import jax.numpy as jnp
from jax.experimental import pallas as pl
from jax.experimental.pallas import tpu as pltpu


def _fused_kernel(x1_ref, x2_ref, out_ref):
    # x1_ref / x2_ref: (Bt, N, N) blocks in VMEM; out_ref: (Bt, 2N, N).
    n = x1_ref.shape[-1]
    x1 = x1_ref[...]
    x2 = x2_ref[...]
    in_dtype = x1.dtype

    # v1 = x2^T @ x1   (transpose folded into the contraction; MXU operand path)
    v1 = jnp.einsum('bki,bkj->bij', x2, x1,
                    preferred_element_type=jnp.float32).astype(in_dtype)
    # v2 = x2^T @ v1   (bit-identical to v4 -> computed once)
    v2 = jnp.einsum('bki,bkj->bij', x2, v1,
                    preferred_element_type=jnp.float32).astype(in_dtype)
    # v5 = x1 @ v2^T   (transpose folded into the contraction)
    v5 = jnp.einsum('bik,bjk->bij', x1, v2,
                    preferred_element_type=jnp.float32)

    # torch.cat((v5, v4), dim=1) with v4 == v2.
    out_ref[:, :n, :] = v5.astype(out_ref.dtype)
    out_ref[:, n:, :] = v2.astype(out_ref.dtype)


def _vmem_plan():
    """(working-set budget bytes, vmem_limit_bytes) per TPU generation."""
    mib = 1024 * 1024
    try:
        cap = int(pltpu.get_tpu_info().vmem_capacity_bytes)
    except Exception:
        cap = None
    if cap is None or cap <= 64 * mib:
        # v7x-class (64 MiB physical per TC) or unknown: stay conservative.
        return 24 * mib, 40 * mib
    # v5e / v6e: 128 MiB physical; default scoped limit (16/32 MiB) is raised.
    return 48 * mib, 96 * mib


def _pick_bt(B, N, itemsize, budget_bytes):
    """Batch-tile size: as big as the VMEM budget allows (amortizes the
    ~0.35us/grid-step overhead and issues bigger DMAs), capped for compile
    size, never forcing extra grid steps for tiny problems."""
    # Per batch element resident in VMEM at once:
    #   double-buffered x1 + x2 blocks : 2 inputs * 2 buffers * N^2 * itemsize
    #   double-buffered output block   : 2 buffers * 2N^2 * itemsize
    #   ~5 live f32 NxN intermediates  : v1, v2, v5 + operand value copies
    per_elem = 8 * N * N * itemsize + 5 * N * N * 4
    bt = max(1, budget_bytes // per_elem)
    return int(min(bt, B, 128))


def fused_permute_matmul(x1, x2):
    """Pallas implementation of Model.forward for (B, N, N) inputs."""
    B, N, _ = x1.shape
    assert x1.shape == x2.shape == (B, N, N), "module implies square (B,N,N) inputs"

    budget, vmem_limit = _vmem_plan()
    bt = _pick_bt(B, N, x1.dtype.itemsize, budget)

    # Ragged batch: zero-pad to a multiple of bt (zero blocks -> zero outputs,
    # sliced off below) instead of shrinking bt.
    n_blocks = pl.cdiv(B, bt)
    Bp = n_blocks * bt
    if Bp != B:
        pad = Bp - B
        x1 = jnp.pad(x1, ((0, pad), (0, 0), (0, 0)))
        x2 = jnp.pad(x2, ((0, pad), (0, 0), (0, 0)))

    cost = pl.CostEstimate(
        flops=3 * 2 * B * N * N * N,                    # 3 NxNxN matmuls / elem
        transcendentals=0,
        bytes_accessed=4 * B * N * N * x1.dtype.itemsize,  # 2 inputs + (2N,N) out
    )

    out = pl.pallas_call(
        _fused_kernel,
        out_shape=jax.ShapeDtypeStruct((Bp, 2 * N, N), x1.dtype),
        grid_spec=pltpu.PrefetchScalarGridSpec(
            num_scalar_prefetch=0,
            grid=(n_blocks,),
            in_specs=[
                pl.BlockSpec((bt, N, N), lambda i: (i, 0, 0)),
                pl.BlockSpec((bt, N, N), lambda i: (i, 0, 0)),
            ],
            out_specs=pl.BlockSpec((bt, 2 * N, N), lambda i: (i, 0, 0)),
        ),
        compiler_params=pltpu.CompilerParams(
            dimension_semantics=("parallel",),
            vmem_limit_bytes=vmem_limit,
        ),
        cost_estimate=cost,
    )(x1, x2)

    return out[:B] if Bp != B else out


def _reference(x1, x2):
    v0 = jnp.swapaxes(x2, 1, 2)
    v1 = jnp.matmul(v0, x1)
    v2 = jnp.matmul(v0, v1)
    v3 = jnp.swapaxes(v2, 1, 2)
    v4 = jnp.matmul(v0, v1)
    v5 = jnp.matmul(x1, v3)
    return jnp.concatenate((v5, v4), axis=1)


if __name__ == "__main__":
    key = jax.random.PRNGKey(0)
    k1, k2 = jax.random.split(key)
    B, N = 2, 32
    x1 = jax.random.normal(k1, (B, N, N), dtype=jnp.float32)
    x2 = jax.random.normal(k2, (B, N, N), dtype=jnp.float32)

    out = jax.block_until_ready(fused_permute_matmul(x1, x2))
    ref = jax.block_until_ready(_reference(x1, x2))

    assert out.shape == (B, 2 * N, N)
    assert jnp.allclose(out, ref, atol=1e-4, rtol=1e-4)

    print("KERNEL_OK")
</pallas_src>

<mosaic_0001>
module attributes {stable_mosaic.version = 11 : i64} {
  func.func @_fused_kernel(%arg0: i32, %arg1: memref<2x32x32xf32, #tpu.memory_space<vmem>>, %arg2: memref<2x32x32xf32, #tpu.memory_space<vmem>>, %arg3: memref<2x64x32xf32, #tpu.memory_space<vmem>>) attributes {dimension_semantics = [#tpu.dimension_semantics<parallel>], iteration_bounds = array<i64: 1>, scalar_prefetch = 0 : i64, scratch_operands = 0 : i64, tpu.core_type = #tpu.core_type<tc>, window_params = [{transform_indices = @transform_0, window_bounds = array<i64: 2, 32, 32>}, {transform_indices = @transform_1, window_bounds = array<i64: 2, 32, 32>}, {transform_indices = @transform_2, window_bounds = array<i64: 2, 64, 32>}]} {
    %c0 = arith.constant 0 : index
    %c0_0 = arith.constant 0 : index
    %c0_1 = arith.constant 0 : index
    %0 = vector.load %arg1[%c0, %c0_0, %c0_1] : memref<2x32x32xf32, #tpu.memory_space<vmem>>, vector<2x32x32xf32>
    %c0_2 = arith.constant 0 : index
    %c0_3 = arith.constant 0 : index
    %c0_4 = arith.constant 0 : index
    %1 = vector.load %arg2[%c0_2, %c0_3, %c0_4] : memref<2x32x32xf32, #tpu.memory_space<vmem>>, vector<2x32x32xf32>
    "tpu.trace_start"() <{level = 10 : i32, message = "bki,bkj->bij"}> : () -> ()
    %cst = arith.constant dense<0.000000e+00> : vector<2x32x32xf32>
    %2 = tpu.matmul %1, %0, %cst {dimension_numbers = #tpu.dot_dimension_numbers<[1], [1], [2], [2], [0, 0, 0, 2, 1, 2], [0], [0]>} : vector<2x32x32xf32>, vector<2x32x32xf32>, vector<2x32x32xf32> -> vector<2x32x32xf32>
    %cst_5 = arith.constant dense<0.000000e+00> : vector<2x32x32xf32>
    %3 = tpu.matmul %1, %2, %cst_5 {dimension_numbers = #tpu.dot_dimension_numbers<[1], [1], [2], [2], [0, 0, 0, 2, 1, 2], [0], [0]>} : vector<2x32x32xf32>, vector<2x32x32xf32>, vector<2x32x32xf32> -> vector<2x32x32xf32>
    "tpu.trace_stop"() : () -> ()
    "tpu.trace_start"() <{level = 10 : i32, message = "bik,bjk->bij"}> : () -> ()
    %cst_6 = arith.constant dense<0.000000e+00> : vector<2x32x32xf32>
    %4 = tpu.matmul %0, %3, %cst_6 {dimension_numbers = #tpu.dot_dimension_numbers<[2], [2], [1], [1], [0, 0, 0, 1, 1, 1], [0], [0]>} : vector<2x32x32xf32>, vector<2x32x32xf32>, vector<2x32x32xf32> -> vector<2x32x32xf32>
    "tpu.trace_stop"() : () -> ()
    %c0_7 = arith.constant 0 : index
    %c0_8 = arith.constant 0 : index
    %c0_9 = arith.constant 0 : index
    %5 = vector.load %arg3[%c0_7, %c0_8, %c0_9] : memref<2x64x32xf32, #tpu.memory_space<vmem>>, vector<2x32x32xf32>
    tpu.vector_store %arg3[%c0_7, %c0_8, %c0_9], %4 {strides = array<i32>} : memref<2x64x32xf32, #tpu.memory_space<vmem>>, vector<2x32x32xf32>,
    %c0_10 = arith.constant 0 : index
    %c32 = arith.constant 32 : index
    %c0_11 = arith.constant 0 : index
    %6 = vector.load %arg3[%c0_10, %c32, %c0_11] : memref<2x64x32xf32, #tpu.memory_space<vmem>>, vector<2x32x32xf32>
    tpu.vector_store %arg3[%c0_10, %c32, %c0_11], %3 {strides = array<i32>} : memref<2x64x32xf32, #tpu.memory_space<vmem>>, vector<2x32x32xf32>,
    return
  }
  func.func @transform_0(%arg0: i32) -> (i32, i32, i32) {
    %c0_i32 = arith.constant 0 : i32
    %c0_i32_0 = arith.constant 0 : i32
    %c0_i32_1 = arith.constant 0 : i32
    return %arg0, %c0_i32, %c0_i32_0 : i32, i32, i32
  }
  func.func @transform_1(%arg0: i32) -> (i32, i32, i32) {
    %c0_i32 = arith.constant 0 : i32
    %c0_i32_0 = arith.constant 0 : i32
    %c0_i32_1 = arith.constant 0 : i32
    return %arg0, %c0_i32, %c0_i32_0 : i32, i32, i32
  }
  func.func @transform_2(%arg0: i32) -> (i32, i32, i32) {
    %c0_i32 = arith.constant 0 : i32
    %c0_i32_0 = arith.constant 0 : i32
    %c0_i32_1 = arith.constant 0 : i32
    return %arg0, %c0_i32, %c0_i32_0 : i32, i32, i32
  }
}

</mosaic_0001>

<llo_original>
// kernel: tpu_custom_call.1
$region0: #{tpu_custom_call.1}
  #allocation0 [shape = 'u32[]', space=smem, size = 0x4, offset = 0x4, fixed_abs, tag = 'smem constant byte address 0x4 - core index']
  #allocation1 [shape = 'u32[144,128]{1,0:T(1,128)}', space=vmem, size = 0x12000, scoped, tag = 'internal scratch']
  %s0 = inlined_call_operand.hbm [shape: f32[2,32,32], index: 0, kind: input, shape index: {}]
  %s1 = inlined_call_operand.hbm [shape: f32[2,32,32], index: 1, kind: input, shape index: {}]
  %s2 = inlined_call_operand.vmem [shape: f32[2,64,32], index: 2, kind: output, shape index: {}]
  %s3 = sld [smem:[#allocation0]]
  $region26: #{tpu_custom_call.1} parent=0
    _
  %s5 = ssub.s32 1, %s3
  %s6 = scalar_select 0, %s5, %s3
  $region1: #{tpu_custom_call.1} parent=0
    #allocation2 [shape = 'u8[32768]{0}', space=vmem, size = 0x8000, scoped, tag = 'input window, operand 0, single buffered']
    #allocation3 [shape = 's32[1]{0}', space=sflag, size = 0x4, scoped, tag = 'scoped memory for tpu_custom_call.1']
    #allocation4 [shape = 'u8[32768]{0}', space=vmem, size = 0x8000, scoped, tag = 'input window, operand 1, single buffered']
    #allocation5 [shape = 's32[1]{0}', space=sflag, size = 0x4, scoped, tag = 'scoped memory for tpu_custom_call.1']
    %7 = vsyncpa [#allocation3], 0
    %8 = vsyncpa [#allocation5], 0
    // Predicated region
    $region2: #{tpu_custom_call.1} parent=1 // pred_check
      _
    $region3: #{tpu_custom_call.1} parent=1 // pred_check_branch
      %10 = sbr.rel (0) target = $region5
    $region4: #{tpu_custom_call.1} parent=1 // pred_region
      %s12 = ssub.s32 1024, 1024
      %13 = vsyncadd [#allocation3], %s12
      %s14 = sshll.u32 [#allocation2], 4
      %s15 = int_to_ptr.vmem [resolvable:$true] %s14
      %20 = dma.hbm_to_vmem [thread:$0]  %s0, 1024, %s15, [#allocation3], 128, 128, 8
    $region5: #{tpu_custom_call.1} parent=1 // pred_fallthru
      _
    // Predicated region
    $region6: #{tpu_custom_call.1} parent=1 // pred_check
      _
    $region7: #{tpu_custom_call.1} parent=1 // pred_check_branch
      %22 = sbr.rel (0) target = $region9
    $region8: #{tpu_custom_call.1} parent=1 // pred_region
      %s24 = ssub.s32 1024, 1024
      %25 = vsyncadd [#allocation5], %s24
      %s26 = sshll.u32 [#allocation4], 4
      %s27 = int_to_ptr.vmem [resolvable:$true] %s26
      %32 = dma.hbm_to_vmem [thread:$0]  %s1, 1024, %s27, [#allocation5], 128, 128, 8
    $region9: #{tpu_custom_call.1} parent=1 // pred_fallthru
      _
    // Predicated region
    $region10: #{tpu_custom_call.1} parent=1 // pred_check
      _
    $region11: #{tpu_custom_call.1} parent=1 // pred_check_branch
      %34 = sbr.rel (0) target = $region13
    $region12: #{tpu_custom_call.1} parent=1 // pred_region
      %35 = dma.done [#allocation3], 1024
    $region13: #{tpu_custom_call.1} parent=1 // pred_fallthru
      _
    // Predicated region
    $region14: #{tpu_custom_call.1} parent=1 // pred_check
      _
    $region15: #{tpu_custom_call.1} parent=1 // pred_check_branch
      %37 = sbr.rel (0) target = $region17
    $region16: #{tpu_custom_call.1} parent=1 // pred_region
      %38 = dma.done [#allocation5], 1024
    $region17: #{tpu_custom_call.1} parent=1 // pred_fallthru
      _
    %v39 = vld [vmem:[#allocation2] sm:$0xff]
    %v40 = vld [vmem:[#allocation2 + $0x8] sm:$0xff]
    %v41 = vld [vmem:[#allocation2 + $0x10] sm:$0xff]
    %v42 = vld [vmem:[#allocation2 + $0x18] sm:$0xff]
    %v43 = vld [vmem:[#allocation2 + $0x20] sm:$0xff]
    %v44 = vld [vmem:[#allocation2 + $0x28] sm:$0xff]
    %v45 = vld [vmem:[#allocation2 + $0x30] sm:$0xff]
    %v46 = vld [vmem:[#allocation2 + $0x38] sm:$0xff]
    %v47 = vld [vmem:[#allocation4] sm:$0xff]
    %v48 = vld [vmem:[#allocation4 + $0x8] sm:$0xff]
    %v49 = vld [vmem:[#allocation4 + $0x10] sm:$0xff]
    %v50 = vld [vmem:[#allocation4 + $0x18] sm:$0xff]
    %v51 = vld [vmem:[#allocation4 + $0x20] sm:$0xff]
    %v52 = vld [vmem:[#allocation4 + $0x28] sm:$0xff]
    %v53 = vld [vmem:[#allocation4 + $0x30] sm:$0xff]
    %v54 = vld [vmem:[#allocation4 + $0x38] sm:$0xff]
    %55 = vxpose.xlu0.b32.start [1/16] %v47, 128
    %56 = vxpose.xlu0.b32.cont [2/16] %v48, 128
    %57 = vxpose.xlu0.b32.cont [3/16] %v49, 128
    %58 = vxpose.xlu0.b32.cont [4/16] %v50, 128
    %59 = vxpose.xlu0.b32.cont [5/16] 0.0, 128
    %60 = vxpose.xlu0.b32.cont [6/16] 0.0, 128
    %61 = vxpose.xlu0.b32.cont [7/16] 0.0, 128
    %62 = vxpose.xlu0.b32.cont [8/16] 0.0, 128
    %63 = vxpose.xlu0.b32.cont [9/16] 0.0, 128
    %64 = vxpose.xlu0.b32.cont [10/16] 0.0, 128
    %65 = vxpose.xlu0.b32.cont [11/16] 0.0, 128
    %66 = vxpose.xlu0.b32.cont [12/16] 0.0, 128
    %67 = vxpose.xlu0.b32.cont [13/16] 0.0, 128
    %68 = vxpose.xlu0.b32.cont [14/16] 0.0, 128
    %69 = vxpose.xlu0.b32.cont [15/16] 0.0, 128
    %70 = vxpose.xlu0.b32.end [16/16] 0.0, 128
    %v71 = vpop.trf.xlu0
    %v72 = vpop.trf.xlu0
    %v73 = vpop.trf.xlu0
    %v74 = vpop.trf.xlu0
    %v75 = vpop.trf.xlu0
    %v76 = vpop.trf.xlu0
    %v77 = vpop.trf.xlu0
    %v78 = vpop.trf.xlu0
    %v79 = vpop.trf.xlu0
    %v80 = vpop.trf.xlu0
    %v81 = vpop.trf.xlu0
    %v82 = vpop.trf.xlu0
    %v83 = vpop.trf.xlu0
    %v84 = vpop.trf.xlu0
    %v85 = vpop.trf.xlu0
    %v86 = vpop.trf.xlu0
    %vm87 = vcmask 261120
    %v89 = vsel %vm87, %v71, 0
    %v92 = vsel %vm87, %v72, 0
    %v95 = vsel %vm87, %v73, 0
    %v98 = vsel %vm87, %v74, 0
    %100 = vmatprep.subr.mxu0 0.0
    %101 = vmatpush1.msra.mxu0 %v39
    %102 = vmatprep.subr.mxu0 0.0
    %103 = vmatpush1.msra.mxu0 %v40
    %104 = vmatprep.subr.mxu0 0.0
    %105 = vmatpush1.msra.mxu0 %v41
    %106 = vmatprep.subr.mxu0 0.0
    %107 = vmatpush1.msra.mxu0 %v42
    %108 = vmatprep.subr.mxu0 0.0
    %109 = vmatpush1.msra.mxu0 0.0
    %110 = vmatprep.subr.mxu0 0.0
    %111 = vmatpush1.msra.mxu0 0.0
    %112 = vmatprep.subr.mxu0 0.0
    %113 = vmatpush1.msra.mxu0 0.0
    %114 = vmatprep.subr.mxu0 0.0
    %115 = vmatpush1.msra.mxu0 0.0
    %116 = vmatprep.subr.mxu0 0.0
    %117 = vmatpush1.msra.mxu0 0.0
    %118 = vmatprep.subr.mxu0 0.0
    %119 = vmatpush1.msra.mxu0 0.0
    %120 = vmatprep.subr.mxu0 0.0
    %121 = vmatpush1.msra.mxu0 0.0
    %122 = vmatprep.subr.mxu0 0.0
    %123 = vmatpush1.msra.mxu0 0.0
    %124 = vmatprep.subr.mxu0 0.0
    %125 = vmatpush1.msra.mxu0 0.0
    %126 = vmatprep.subr.mxu0 0.0
    %127 = vmatpush1.msra.mxu0 0.0
    %128 = vmatprep.subr.mxu0 0.0
    %129 = vmatpush1.msra.mxu0 0.0
    %130 = vmatprep.subr.mxu0 0.0
    %131 = vmatpush1.msra.mxu0 0.0
    %132 = vmatprep.subr.mxu0 0.0
    %133 = vmatpush1.msra.mxu0 0.0
    %134 = vmatprep.subr.mxu0 0.0
    %135 = vmatpush1.msra.mxu0 0.0
    %136 = vmatprep.subr.mxu0 0.0
    %137 = vmatpush1.msra.mxu0 0.0
    %138 = vmatprep.subr.mxu0 0.0
    %139 = vmatpush1.msra.mxu0 0.0
    %140 = vmatprep.subr.mxu0 0.0
    %141 = vmatpush1.msra.mxu0 0.0
    %142 = vmatprep.subr.mxu0 0.0
    %143 = vmatpush1.msra.mxu0 0.0
    %144 = vmatprep.subr.mxu0 0.0
    %145 = vmatpush1.msra.mxu0 0.0
    %146 = vmatprep.subr.mxu0 0.0
    %147 = vmatpush1.msra.mxu0 0.0
    %148 = vmatprep.subr.mxu0 0.0
    %149 = vmatpush1.msra.mxu0 0.0
    %150 = vmatprep.subr.mxu0 0.0
    %151 = vmatpush1.msra.mxu0 0.0
    %152 = vmatprep.subr.mxu0 0.0
    %153 = vmatpush1.msra.mxu0 0.0
    %154 = vmatprep.subr.mxu0 0.0
    %155 = vmatpush1.msra.mxu0 0.0
    %156 = vmatprep.subr.mxu0 0.0
    %157 = vmatpush1.msra.mxu0 0.0
    %158 = vmatprep.subr.mxu0 0.0
    %159 = vmatpush1.msra.mxu0 0.0
    %160 = vmatprep.subr.mxu0 0.0
    %161 = vmatpush1.msra.mxu0 0.0
    %162 = vmatprep.subr.mxu0 0.0
    %163 = vmatpush1.msra.mxu0 0.0
    %164 = vmatprep.mubr.f32.mxu0 0.0
    %165 = vmatmul.mubr.f32.gmra.mrb[0].mxu0 %v89
    %v166 = vpop.f32.mrb[0].mxu0
    %v167 = vadd.f32 0.0, %v166
    %v168 = vpop.f32.mrb[0].mxu0
    %169 = vmatprep.mubr.f32.mxu0 0.0
    %170 = vmatmul.mubr.f32.gmra.mrb[0].mxu0 %v92
    %v171 = vpop.f32.mrb[0].mxu0
    %v172 = vadd.f32 0.0, %v171
    %v173 = vpop.f32.mrb[0].mxu0
    %174 = vmatprep.mubr.f32.mxu0 0.0
    %175 = vmatmul.mubr.f32.gmra.mrb[0].mxu0 %v95
    %v176 = vpop.f32.mrb[0].mxu0
    %v177 = vadd.f32 0.0, %v176
    %v178 = vpop.f32.mrb[0].mxu0
    %179 = vmatprep.mubr.f32.mxu0 0.0
    %180 = vmatmul.mubr.f32.gmra.mrb[0].mxu0 %v98
    %v181 = vpop.f32.mrb[0].mxu0
    %v182 = vadd.f32 0.0, %v181
    %v183 = vpop.f32.mrb[0].mxu0
    %184 = vdwg.mxu0
    %185 = vxpose.xlu0.b32.start [1/16] %v51, 128
    %186 = vxpose.xlu0.b32.cont [2/16] %v52, 128
    %187 = vxpose.xlu0.b32.cont [3/16] %v53, 128
    %188 = vxpose.xlu0.b32.cont [4/16] %v54, 128
    %189 = vxpose.xlu0.b32.cont [5/16] 0.0, 128
    %190 = vxpose.xlu0.b32.cont [6/16] 0.0, 128
    %191 = vxpose.xlu0.b32.cont [7/16] 0.0, 128
    %192 = vxpose.xlu0.b32.cont [8/16] 0.0, 128
    %193 = vxpose.xlu0.b32.cont [9/16] 0.0, 128
    %194 = vxpose.xlu0.b32.cont [10/16] 0.0, 128
    %195 = vxpose.xlu0.b32.cont [11/16] 0.0, 128
    %196 = vxpose.xlu0.b32.cont [12/16] 0.0, 128
    %197 = vxpose.xlu0.b32.cont [13/16] 0.0, 128
    %198 = vxpose.xlu0.b32.cont [14/16] 0.0, 128
    %199 = vxpose.xlu0.b32.cont [15/16] 0.0, 128
    %200 = vxpose.xlu0.b32.end [16/16] 0.0, 128
    %v201 = vpop.trf.xlu0
    %v202 = vpop.trf.xlu0
    %v203 = vpop.trf.xlu0
    %v204 = vpop.trf.xlu0
    %v205 = vpop.trf.xlu0
    %v206 = vpop.trf.xlu0
    %v207 = vpop.trf.xlu0
    %v208 = vpop.trf.xlu0
    %v209 = vpop.trf.xlu0
    %v210 = vpop.trf.xlu0
    %v211 = vpop.trf.xlu0
    %v212 = vpop.trf.xlu0
    %v213 = vpop.trf.xlu0
    %v214 = vpop.trf.xlu0
    %v215 = vpop.trf.xlu0
    %v216 = vpop.trf.xlu0
    %v218 = vsel %vm87, %v201, 0
    %v221 = vsel %vm87, %v202, 0
    %v224 = vsel %vm87, %v203, 0
    %v227 = vsel %vm87, %v204, 0
    %229 = vmatprep.subr.mxu0 0.0
    %230 = vmatpush1.msra.mxu0 %v43
    %231 = vmatprep.subr.mxu0 0.0
    %232 = vmatpush1.msra.mxu0 %v44
    %233 = vmatprep.subr.mxu0 0.0
    %234 = vmatpush1.msra.mxu0 %v45
    %235 = vmatprep.subr.mxu0 0.0
    %236 = vmatpush1.msra.mxu0 %v46
    %237 = vmatprep.subr.mxu0 0.0
    %238 = vmatpush1.msra.mxu0 0.0
    %239 = vmatprep.subr.mxu0 0.0
    %240 = vmatpush1.msra.mxu0 0.0
    %241 = vmatprep.subr.mxu0 0.0
    %242 = vmatpush1.msra.mxu0 0.0
    %243 = vmatprep.subr.mxu0 0.0
    %244 = vmatpush1.msra.mxu0 0.0
    %245 = vmatprep.subr.mxu0 0.0
    %246 = vmatpush1.msra.mxu0 0.0
    %247 = vmatprep.subr.mxu0 0.0
    %248 = vmatpush1.msra.mxu0 0.0
    %249 = vmatprep.subr.mxu0 0.0
    %250 = vmatpush1.msra.mxu0 0.0
    %251 = vmatprep.subr.mxu0 0.0
    %252 = vmatpush1.msra.mxu0 0.0
    %253 = vmatprep.subr.mxu0 0.0
    %254 = vmatpush1.msra.mxu0 0.0
    %255 = vmatprep.subr.mxu0 0.0
    %256 = vmatpush1.msra.mxu0 0.0
    %257 = vmatprep.subr.mxu0 0.0
    %258 = vmatpush1.msra.mxu0 0.0
    %259 = vmatprep.subr.mxu0 0.0
    %260 = vmatpush1.msra.mxu0 0.0
    %261 = vmatprep.subr.mxu0 0.0
    %262 = vmatpush1.msra.mxu0 0.0
    %263 = vmatprep.subr.mxu0 0.0
    %264 = vmatpush1.msra.mxu0 0.0
    %265 = vmatprep.subr.mxu0 0.0
    %266 = vmatpush1.msra.mxu0 0.0
    %267 = vmatprep.subr.mxu0 0.0
    %268 = vmatpush1.msra.mxu0 0.0
    %269 = vmatprep.subr.mxu0 0.0
    %270 = vmatpush1.msra.mxu0 0.0
    %271 = vmatprep.subr.mxu0 0.0
    %272 = vmatpush1.msra.mxu0 0.0
    %273 = vmatprep.subr.mxu0 0.0
    %274 = vmatpush1.msra.mxu0 0.0
    %275 = vmatprep.subr.mxu0 0.0
    %276 = vmatpush1.msra.mxu0 0.0
    %277 = vmatprep.subr.mxu0 0.0
    %278 = vmatpush1.msra.mxu0 0.0
    %279 = vmatprep.subr.mxu0 0.0
    %280 = vmatpush1.msra.mxu0 0.0
    %281 = vmatprep.subr.mxu0 0.0
    %282 = vmatpush1.msra.mxu0 0.0
    %283 = vmatprep.subr.mxu0 0.0
    %284 = vmatpush1.msra.mxu0 0.0
    %285 = vmatprep.subr.mxu0 0.0
    %286 = vmatpush1.msra.mxu0 0.0
    %287 = vmatprep.subr.mxu0 0.0
    %288 = vmatpush1.msra.mxu0 0.0
    %289 = vmatprep.subr.mxu0 0.0
    %290 = vmatpush1.msra.mxu0 0.0
    %291 = vmatprep.subr.mxu0 0.0
    %292 = vmatpush1.msra.mxu0 0.0
    %293 = vmatprep.mubr.f32.mxu0 0.0
    %294 = vmatmul.mubr.f32.gmra.mrb[0].mxu0 %v218
    %v295 = vpop.f32.mrb[0].mxu0
    %v296 = vadd.f32 0.0, %v295
    %v297 = vpop.f32.mrb[0].mxu0
    %298 = vmatprep.mubr.f32.mxu0 0.0
    %299 = vmatmul.mubr.f32.gmra.mrb[0].mxu0 %v221
    %v300 = vpop.f32.mrb[0].mxu0
    %v301 = vadd.f32 0.0, %v300
    %v302 = vpop.f32.mrb[0].mxu0
    %303 = vmatprep.mubr.f32.mxu0 0.0
    %304 = vmatmul.mubr.f32.gmra.mrb[0].mxu0 %v224
    %v305 = vpop.f32.mrb[0].mxu0
    %v306 = vadd.f32 0.0, %v305
    %v307 = vpop.f32.mrb[0].mxu0
    %308 = vmatprep.mubr.f32.mxu0 0.0
    %309 = vmatmul.mubr.f32.gmra.mrb[0].mxu0 %v227
    %v310 = vpop.f32.mrb[0].mxu0
    %v311 = vadd.f32 0.0, %v310
    %v312 = vpop.f32.mrb[0].mxu0
    %313 = vdwg.mxu0
    %314 = vmatprep.subr.mxu0 0.0
    %315 = vmatpush1.msra.mxu0 %v167
    %316 = vmatprep.subr.mxu0 0.0
    %317 = vmatpush1.msra.mxu0 %v172
    %318 = vmatprep.subr.mxu0 0.0
    %319 = vmatpush1.msra.mxu0 %v177
    %320 = vmatprep.subr.mxu0 0.0
    %321 = vmatpush1.msra.mxu0 %v182
    %322 = vmatprep.subr.mxu0 0.0
    %323 = vmatpush1.msra.mxu0 0.0
    %324 = vmatprep.subr.mxu0 0.0
    %325 = vmatpush1.msra.mxu0 0.0
    %326 = vmatprep.subr.mxu0 0.0
    %327 = vmatpush1.msra.mxu0 0.0
    %328 = vmatprep.subr.mxu0 0.0
    %329 = vmatpush1.msra.mxu0 0.0
    %330 = vmatprep.subr.mxu0 0.0
    %331 = vmatpush1.msra.mxu0 0.0
    %332 = vmatprep.subr.mxu0 0.0
    %333 = vmatpush1.msra.mxu0 0.0
    %334 = vmatprep.subr.mxu0 0.0
    %335 = vmatpush1.msra.mxu0 0.0
    %336 = vmatprep.subr.mxu0 0.0
    %337 = vmatpush1.msra.mxu0 0.0
    %338 = vmatprep.subr.mxu0 0.0
    %339 = vmatpush1.msra.mxu0 0.0
    %340 = vmatprep.subr.mxu0 0.0
    %341 = vmatpush1.msra.mxu0 0.0
    %342 = vmatprep.subr.mxu0 0.0
    %343 = vmatpush1.msra.mxu0 0.0
    %344 = vmatprep.subr.mxu0 0.0
    %345 = vmatpush1.msra.mxu0 0.0
    %346 = vmatprep.subr.mxu0 0.0
    %347 = vmatpush1.msra.mxu0 0.0
    %348 = vmatprep.subr.mxu0 0.0
    %349 = vmatpush1.msra.mxu0 0.0
    %350 = vmatprep.subr.mxu0 0.0
    %351 = vmatpush1.msra.mxu0 0.0
    %352 = vmatprep.subr.mxu0 0.0
    %353 = vmatpush1.msra.mxu0 0.0
    %354 = vmatprep.subr.mxu0 0.0
    %355 = vmatpush1.msra.mxu0 0.0
    %356 = vmatprep.subr.mxu0 0.0
    %357 = vmatpush1.msra.mxu0 0.0
    %358 = vmatprep.subr.mxu0 0.0
    %359 = vmatpush1.msra.mxu0 0.0
    %360 = vmatprep.subr.mxu0 0.0
    %361 = vmatpush1.msra.mxu0 0.0
    %362 = vmatprep.subr.mxu0 0.0
    %363 = vmatpush1.msra.mxu0 0.0
    %364 = vmatprep.subr.mxu0 0.0
    %365 = vmatpush1.msra.mxu0 0.0
    %366 = vmatprep.subr.mxu0 0.0
    %367 = vmatpush1.msra.mxu0 0.0
    %368 = vmatprep.subr.mxu0 0.0
    %369 = vmatpush1.msra.mxu0 0.0
    %370 = vmatprep.subr.mxu0 0.0
    %371 = vmatpush1.msra.mxu0 0.0
    %372 = vmatprep.subr.mxu0 0.0
    %373 = vmatpush1.msra.mxu0 0.0
    %374 = vmatprep.subr.mxu0 0.0
    %375 = vmatpush1.msra.mxu0 0.0
    %376 = vmatprep.subr.mxu0 0.0
    %377 = vmatpush1.msra.mxu0 0.0
    %378 = vmatprep.mubr.f32.mxu0 0.0
    %379 = vmatmul.mubr.f32.gmra.mrb[0].mxu0 %v89
    %v380 = vpop.f32.mrb[0].mxu0
    %v381 = vadd.f32 0.0, %v380
    %v382 = vpop.f32.mrb[0].mxu0
    %383 = vmatprep.mubr.f32.mxu0 0.0
    %384 = vmatmul.mubr.f32.gmra.mrb[0].mxu0 %v92
    %v385 = vpop.f32.mrb[0].mxu0
    %v386 = vadd.f32 0.0, %v385
    %v387 = vpop.f32.mrb[0].mxu0
    %388 = vmatprep.mubr.f32.mxu0 0.0
    %389 = vmatmul.mubr.f32.gmra.mrb[0].mxu0 %v95
    %v390 = vpop.f32.mrb[0].mxu0
    %v391 = vadd.f32 0.0, %v390
    %v392 = vpop.f32.mrb[0].mxu0
    %393 = vmatprep.mubr.f32.mxu0 0.0
    %394 = vmatmul.mubr.f32.gmra.mrb[0].mxu0 %v98
    %v395 = vpop.f32.mrb[0].mxu0
    %v396 = vadd.f32 0.0, %v395
    %v397 = vpop.f32.mrb[0].mxu0
    %398 = vdwg.mxu0
    %399 = vmatprep.subr.mxu0 0.0
    %400 = vmatpush1.msra.mxu0 %v296
    %401 = vmatprep.subr.mxu0 0.0
    %402 = vmatpush1.msra.mxu0 %v301
    %403 = vmatprep.subr.mxu0 0.0
    %404 = vmatpush1.msra.mxu0 %v306
    %405 = vmatprep.subr.mxu0 0.0
    %406 = vmatpush1.msra.mxu0 %v311
    %407 = vmatprep.subr.mxu0 0.0
    %408 = vmatpush1.msra.mxu0 0.0
    %409 = vmatprep.subr.mxu0 0.0
    %410 = vmatpush1.msra.mxu0 0.0
    %411 = vmatprep.subr.mxu0 0.0
    %412 = vmatpush1.msra.mxu0 0.0
    %413 = vmatprep.subr.mxu0 0.0
    %414 = vmatpush1.msra.mxu0 0.0
    %415 = vmatprep.subr.mxu0 0.0
    %416 = vmatpush1.msra.mxu0 0.0
    %417 = vmatprep.subr.mxu0 0.0
    %418 = vmatpush1.msra.mxu0 0.0
    %419 = vmatprep.subr.mxu0 0.0
    %420 = vmatpush1.msra.mxu0 0.0
    %421 = vmatprep.subr.mxu0 0.0
    %422 = vmatpush1.msra.mxu0 0.0
    %423 = vmatprep.subr.mxu0 0.0
    %424 = vmatpush1.msra.mxu0 0.0
    %425 = vmatprep.subr.mxu0 0.0
    %426 = vmatpush1.msra.mxu0 0.0
    %427 = vmatprep.subr.mxu0 0.0
    %428 = vmatpush1.msra.mxu0 0.0
    %429 = vmatprep.subr.mxu0 0.0
    %430 = vmatpush1.msra.mxu0 0.0
    %431 = vmatprep.subr.mxu0 0.0
    %432 = vmatpush1.msra.mxu0 0.0
    %433 = vmatprep.subr.mxu0 0.0
    %434 = vmatpush1.msra.mxu0 0.0
    %435 = vmatprep.subr.mxu0 0.0
    %436 = vmatpush1.msra.mxu0 0.0
    %437 = vmatprep.subr.mxu0 0.0
    %438 = vmatpush1.msra.mxu0 0.0
    %439 = vmatprep.subr.mxu0 0.0
    %440 = vmatpush1.msra.mxu0 0.0
    %441 = vmatprep.subr.mxu0 0.0
    %442 = vmatpush1.msra.mxu0 0.0
    %443 = vmatprep.subr.mxu0 0.0
    %444 = vmatpush1.msra.mxu0 0.0
    %445 = vmatprep.subr.mxu0 0.0
    %446 = vmatpush1.msra.mxu0 0.0
    %447 = vmatprep.subr.mxu0 0.0
    %448 = vmatpush1.msra.mxu0 0.0
    %449 = vmatprep.subr.mxu0 0.0
    %450 = vmatpush1.msra.mxu0 0.0
    %451 = vmatprep.subr.mxu0 0.0
    %452 = vmatpush1.msra.mxu0 0.0
    %453 = vmatprep.subr.mxu0 0.0
    %454 = vmatpush1.msra.mxu0 0.0
    %455 = vmatprep.subr.mxu0 0.0
    %456 = vmatpush1.msra.mxu0 0.0
    %457 = vmatprep.subr.mxu0 0.0
    %458 = vmatpush1.msra.mxu0 0.0
    %459 = vmatprep.subr.mxu0 0.0
    %460 = vmatpush1.msra.mxu0 0.0
    %461 = vmatprep.subr.mxu0 0.0
    %462 = vmatpush1.msra.mxu0 0.0
    %463 = vmatprep.mubr.f32.mxu0 0.0
    %464 = vmatmul.mubr.f32.gmra.mrb[0].mxu0 %v218
    %v465 = vpop.f32.mrb[0].mxu0
    %v466 = vadd.f32 0.0, %v465
    %v467 = vpop.f32.mrb[0].mxu0
    %468 = vmatprep.mubr.f32.mxu0 0.0
    %469 = vmatmul.mubr.f32.gmra.mrb[0].mxu0 %v221
    %v470 = vpop.f32.mrb[0].mxu0
    %v471 = vadd.f32 0.0, %v470
    %v472 = vpop.f32.mrb[0].mxu0
    %473 = vmatprep.mubr.f32.mxu0 0.0
    %474 = vmatmul.mubr.f32.gmra.mrb[0].mxu0 %v224
    %v475 = vpop.f32.mrb[0].mxu0
    %v476 = vadd.f32 0.0, %v475
    %v477 = vpop.f32.mrb[0].mxu0
    %478 = vmatprep.mubr.f32.mxu0 0.0
    %479 = vmatmul.mubr.f32.gmra.mrb[0].mxu0 %v227
    %v480 = vpop.f32.mrb[0].mxu0
    %v481 = vadd.f32 0.0, %v480
    %v482 = vpop.f32.mrb[0].mxu0
    %483 = vdwg.mxu0
    %v485 = vsel %vm87, %v39, 0
    %v488 = vsel %vm87, %v40, 0
    %v491 = vsel %vm87, %v41, 0
    %v494 = vsel %vm87, %v42, 0
    %v497 = vsel %vm87, %v381, 0
    %v500 = vsel %vm87, %v386, 0
    %v503 = vsel %vm87, %v391, 0
    %v506 = vsel %vm87, %v396, 0
    %508 = vmatprep.subr.mxu0 0.0
    %509 = vmatpush1.xpose.msra.mxu0 %v497
    %510 = vmatprep.subr.mxu0 0.0
    %511 = vmatpush1.xpose.msra.mxu0 %v500
    %512 = vmatprep.subr.mxu0 0.0
    %513 = vmatpush1.xpose.msra.mxu0 %v503
    %514 = vmatprep.subr.mxu0 0.0
    %515 = vmatpush1.xpose.msra.mxu0 %v506
    %516 = vmatprep.subr.mxu0 0.0
    %517 = vmatpush1.xpose.msra.mxu0 0.0
    %518 = vmatprep.subr.mxu0 0.0
    %519 = vmatpush1.xpose.msra.mxu0 0.0
    %520 = vmatprep.subr.mxu0 0.0
    %521 = vmatpush1.xpose.msra.mxu0 0.0
    %522 = vmatprep.subr.mxu0 0.0
    %523 = vmatpush1.xpose.msra.mxu0 0.0
    %524 = vmatprep.subr.mxu0 0.0
    %525 = vmatpush1.xpose.msra.mxu0 0.0
    %526 = vmatprep.subr.mxu0 0.0
    %527 = vmatpush1.xpose.msra.mxu0 0.0
    %528 = vmatprep.subr.mxu0 0.0
    %529 = vmatpush1.xpose.msra.mxu0 0.0
    %530 = vmatprep.subr.mxu0 0.0
    %531 = vmatpush1.xpose.msra.mxu0 0.0
    %532 = vmatprep.subr.mxu0 0.0
    %533 = vmatpush1.xpose.msra.mxu0 0.0
    %534 = vmatprep.subr.mxu0 0.0
    %535 = vmatpush1.xpose.msra.mxu0 0.0
    %536 = vmatprep.subr.mxu0 0.0
    %537 = vmatpush1.xpose.msra.mxu0 0.0
    %538 = vmatprep.subr.mxu0 0.0
    %539 = vmatpush1.xpose.msra.mxu0 0.0
    %540 = vmatprep.subr.mxu0 0.0
    %541 = vmatpush1.xpose.msra.mxu0 0.0
    %542 = vmatprep.subr.mxu0 0.0
    %543 = vmatpush1.xpose.msra.mxu0 0.0
    %544 = vmatprep.subr.mxu0 0.0
    %545 = vmatpush1.xpose.msra.mxu0 0.0
    %546 = vmatprep.subr.mxu0 0.0
    %547 = vmatpush1.xpose.msra.mxu0 0.0
    %548 = vmatprep.subr.mxu0 0.0
    %549 = vmatpush1.xpose.msra.mxu0 0.0
    %550 = vmatprep.subr.mxu0 0.0
    %551 = vmatpush1.xpose.msra.mxu0 0.0
    %552 = vmatprep.subr.mxu0 0.0
    %553 = vmatpush1.xpose.msra.mxu0 0.0
    %554 = vmatprep.subr.mxu0 0.0
    %555 = vmatpush1.xpose.msra.mxu0 0.0
    %556 = vmatprep.subr.mxu0 0.0
    %557 = vmatpush1.xpose.msra.mxu0 0.0
    %558 = vmatprep.subr.mxu0 0.0
    %559 = vmatpush1.xpose.msra.mxu0 0.0
    %560 = vmatprep.subr.mxu0 0.0
    %561 = vmatpush1.xpose.msra.mxu0 0.0
    %562 = vmatprep.subr.mxu0 0.0
    %563 = vmatpush1.xpose.msra.mxu0 0.0
    %564 = vmatprep.subr.mxu0 0.0
    %565 = vmatpush1.xpose.msra.mxu0 0.0
    %566 = vmatprep.subr.mxu0 0.0
    %567 = vmatpush1.xpose.msra.mxu0 0.0
    %568 = vmatprep.subr.mxu0 0.0
    %569 = vmatpush1.xpose.msra.mxu0 0.0
    %570 = vmatprep.subr.mxu0 0.0
    %571 = vmatpush1.xpose.msra.mxu0 0.0
    %572 = vmatprep.mubr.f32.mxu0 0.0
    %573 = vmatmul.mubr.f32.gmra.mrb[0].mxu0 %v485
    %v574 = vpop.f32.mrb[0].mxu0
    %v575 = vadd.f32 0.0, %v574
    %v576 = vpop.f32.mrb[0].mxu0
    %577 = vmatprep.mubr.f32.mxu0 0.0
    %578 = vmatmul.mubr.f32.gmra.mrb[0].mxu0 %v488
    %v579 = vpop.f32.mrb[0].mxu0
    %v580 = vadd.f32 0.0, %v579
    %v581 = vpop.f32.mrb[0].mxu0
    %582 = vmatprep.mubr.f32.mxu0 0.0
    %583 = vmatmul.mubr.f32.gmra.mrb[0].mxu0 %v491
    %v584 = vpop.f32.mrb[0].mxu0
    %v585 = vadd.f32 0.0, %v584
    %v586 = vpop.f32.mrb[0].mxu0
    %587 = vmatprep.mubr.f32.mxu0 0.0
    %588 = vmatmul.mubr.f32.gmra.mrb[0].mxu0 %v494
    %v589 = vpop.f32.mrb[0].mxu0
    %v590 = vadd.f32 0.0, %v589
    %v591 = vpop.f32.mrb[0].mxu0
    %592 = vdwg.mxu0
    %v594 = vsel %vm87, %v43, 0
    %v597 = vsel %vm87, %v44, 0
    %v600 = vsel %vm87, %v45, 0
    %v603 = vsel %vm87, %v46, 0
    %v606 = vsel %vm87, %v466, 0
    %v609 = vsel %vm87, %v471, 0
    %v612 = vsel %vm87, %v476, 0
    %v615 = vsel %vm87, %v481, 0
    %617 = vmatprep.subr.mxu0 0.0
    %618 = vmatpush1.xpose.msra.mxu0 %v606
    %619 = vmatprep.subr.mxu0 0.0
    %620 = vmatpush1.xpose.msra.mxu0 %v609
    %621 = vmatprep.subr.mxu0 0.0
    %622 = vmatpush1.xpose.msra.mxu0 %v612
    %623 = vmatprep.subr.mxu0 0.0
    %624 = vmatpush1.xpose.msra.mxu0 %v615
    %625 = vmatprep.subr.mxu0 0.0
    %626 = vmatpush1.xpose.msra.mxu0 0.0
    %627 = vmatprep.subr.mxu0 0.0
    %628 = vmatpush1.xpose.msra.mxu0 0.0
    %629 = vmatprep.subr.mxu0 0.0
    %630 = vmatpush1.xpose.msra.mxu0 0.0
    %631 = vmatprep.subr.mxu0 0.0
    %632 = vmatpush1.xpose.msra.mxu0 0.0
    %633 = vmatprep.subr.mxu0 0.0
    %634 = vmatpush1.xpose.msra.mxu0 0.0
    %635 = vmatprep.subr.mxu0 0.0
    %636 = vmatpush1.xpose.msra.mxu0 0.0
    %637 = vmatprep.subr.mxu0 0.0
    %638 = vmatpush1.xpose.msra.mxu0 0.0
    %639 = vmatprep.subr.mxu0 0.0
    %640 = vmatpush1.xpose.msra.mxu0 0.0
    %641 = vmatprep.subr.mxu0 0.0
    %642 = vmatpush1.xpose.msra.mxu0 0.0
    %643 = vmatprep.subr.mxu0 0.0
    %644 = vmatpush1.xpose.msra.mxu0 0.0
    %645 = vmatprep.subr.mxu0 0.0
    %646 = vmatpush1.xpose.msra.mxu0 0.0
    %647 = vmatprep.subr.mxu0 0.0
    %648 = vmatpush1.xpose.msra.mxu0 0.0
    %649 = vmatprep.subr.mxu0 0.0
    %650 = vmatpush1.xpose.msra.mxu0 0.0
    %651 = vmatprep.subr.mxu0 0.0
    %652 = vmatpush1.xpose.msra.mxu0 0.0
    %653 = vmatprep.subr.mxu0 0.0
    %654 = vmatpush1.xpose.msra.mxu0 0.0
    %655 = vmatprep.subr.mxu0 0.0
    %656 = vmatpush1.xpose.msra.mxu0 0.0
    %657 = vmatprep.subr.mxu0 0.0
    %658 = vmatpush1.xpose.msra.mxu0 0.0
    %659 = vmatprep.subr.mxu0 0.0
    %660 = vmatpush1.xpose.msra.mxu0 0.0
    %661 = vmatprep.subr.mxu0 0.0
    %662 = vmatpush1.xpose.msra.mxu0 0.0
    %663 = vmatprep.subr.mxu0 0.0
    %664 = vmatpush1.xpose.msra.mxu0 0.0
    %665 = vmatprep.subr.mxu0 0.0
    %666 = vmatpush1.xpose.msra.mxu0 0.0
    %667 = vmatprep.subr.mxu0 0.0
    %668 = vmatpush1.xpose.msra.mxu0 0.0
    %669 = vmatprep.subr.mxu0 0.0
    %670 = vmatpush1.xpose.msra.mxu0 0.0
    %671 = vmatprep.subr.mxu0 0.0
    %672 = vmatpush1.xpose.msra.mxu0 0.0
    %673 = vmatprep.subr.mxu0 0.0
    %674 = vmatpush1.xpose.msra.mxu0 0.0
    %675 = vmatprep.subr.mxu0 0.0
    %676 = vmatpush1.xpose.msra.mxu0 0.0
    %677 = vmatprep.subr.mxu0 0.0
    %678 = vmatpush1.xpose.msra.mxu0 0.0
    %679 = vmatprep.subr.mxu0 0.0
    %680 = vmatpush1.xpose.msra.mxu0 0.0
    %681 = vmatprep.mubr.f32.mxu0 0.0
    %682 = vmatmul.mubr.f32.gmra.mrb[0].mxu0 %v594
    %v683 = vpop.f32.mrb[0].mxu0
    %v684 = vadd.f32 0.0, %v683
    %v685 = vpop.f32.mrb[0].mxu0
    %686 = vmatprep.mubr.f32.mxu0 0.0
    %687 = vmatmul.mubr.f32.gmra.mrb[0].mxu0 %v597
    %v688 = vpop.f32.mrb[0].mxu0
    %v689 = vadd.f32 0.0, %v688
    %v690 = vpop.f32.mrb[0].mxu0
    %691 = vmatprep.mubr.f32.mxu0 0.0
    %692 = vmatmul.mubr.f32.gmra.mrb[0].mxu0 %v600
    %v693 = vpop.f32.mrb[0].mxu0
    %v694 = vadd.f32 0.0, %v693
    %v695 = vpop.f32.mrb[0].mxu0
    %696 = vmatprep.mubr.f32.mxu0 0.0
    %697 = vmatmul.mubr.f32.gmra.mrb[0].mxu0 %v603
    %v698 = vpop.f32.mrb[0].mxu0
    %v699 = vadd.f32 0.0, %v698
    %v700 = vpop.f32.mrb[0].mxu0
    %701 = vdwg.mxu0
    %702 = vst.msk [vmem:[%s2] sm:$0xff] %vm87, %v575
    %703 = vst.msk [vmem:[%s2 + $0x8] sm:$0xff] %vm87, %v580
    %704 = vst.msk [vmem:[%s2 + $0x10] sm:$0xff] %vm87, %v585
    %705 = vst.msk [vmem:[%s2 + $0x18] sm:$0xff] %vm87, %v590
    %706 = vst.msk [vmem:[%s2 + $0x40] sm:$0xff] %vm87, %v684
    %707 = vst.msk [vmem:[%s2 + $0x48] sm:$0xff] %vm87, %v689
    %708 = vst.msk [vmem:[%s2 + $0x50] sm:$0xff] %vm87, %v694
    %709 = vst.msk [vmem:[%s2 + $0x58] sm:$0xff] %vm87, %v699
    %710 = vst.msk [vmem:[%s2 + $0x20] sm:$0xff] %vm87, %v381
    %711 = vst.msk [vmem:[%s2 + $0x28] sm:$0xff] %vm87, %v386
    %712 = vst.msk [vmem:[%s2 + $0x30] sm:$0xff] %vm87, %v391
    %713 = vst.msk [vmem:[%s2 + $0x38] sm:$0xff] %vm87, %v396
    %714 = vst.msk [vmem:[%s2 + $0x60] sm:$0xff] %vm87, %v466
    %715 = vst.msk [vmem:[%s2 + $0x68] sm:$0xff] %vm87, %v471
    %716 = vst.msk [vmem:[%s2 + $0x70] sm:$0xff] %vm87, %v476
    %717 = vst.msk [vmem:[%s2 + $0x78] sm:$0xff] %vm87, %v481
    // Predicated region
    $region18: #{tpu_custom_call.1} parent=1 // pred_check
      _
    $region19: #{tpu_custom_call.1} parent=1 // pred_check_branch
      %719 = sbr.rel (0) target = $region21
    $region20: #{tpu_custom_call.1} parent=1 // pred_region
      _
    $region21: #{tpu_custom_call.1} parent=1 // pred_fallthru
      _
    // Predicated region
    $region22: #{tpu_custom_call.1} parent=1 // pred_check
      _
    $region23: #{tpu_custom_call.1} parent=1 // pred_check_branch
      %721 = sbr.rel (0) target = $region25
    $region24: #{tpu_custom_call.1} parent=1 // pred_region
      _
    $region25: #{tpu_custom_call.1} parent=1 // pred_fallthru
      _
    %722 = vsyncpa [#allocation3], 1
    %723 = vsyncpa [#allocation5], 1

</llo_original>
